<compile_context>
chip_gen: v5e
topology: v5e:2x2
jax: 0.10.0
libtpu: 0.0.40
codegen_flags: <defaults>
</compile_context>

<pallas_src>
import functools

import jax
import jax.numpy as jnp
from jax.experimental import pallas as pl
from jax.experimental.pallas import tpu as pltpu

_MIB = 1024 * 1024


def _round_up(x, m):
    return ((x + m - 1) // m) * m


def _cdiv(a, b):
    return (a + b - 1) // b


def _pick_tile(dim, candidates):
    for c in candidates:
        if dim % c == 0:
            return c
    return dim


@functools.lru_cache(maxsize=1)
def _hw_budget():
    """(vmem_limit_bytes, resident_weight_bytes, tm_cap, big_vmem) per chip gen."""
    try:
        vmem_cap = int(pltpu.get_tpu_info().vmem_capacity_bytes)
    except Exception:
        vmem_cap = 64 * _MIB  # conservative (v7x-sized) fallback
    if vmem_cap >= 96 * _MIB:          # v5e / v6e: 128 MiB physical VMEM
        return 96 * _MIB, 16 * _MIB, 1024, True
    # v7x: 64 MiB physical VMEM, 2 TensorCores
    return 40 * _MIB, 4 * _MIB, 512, False


# --------------------------------------------------------------------------
# Kernels
# --------------------------------------------------------------------------
def _linear_resident_kernel(x_ref, w_ref, b_ref, o_ref):
    # x_ref: (tm, K) bf16, w_ref: (K, N) bf16 fully resident,
    # b_ref: (1, N) f32, o_ref: (tm, N) out dtype.  f32 MXU accumulate.
    acc = jnp.dot(x_ref[...], w_ref[...], preferred_element_type=jnp.float32)
    o_ref[...] = (acc + b_ref[...]).astype(o_ref.dtype)


def _linear_tiled_kernel(x_ref, w_ref, b_ref, o_ref, acc_ref):
    # x_ref: (tm, tk), w_ref: (tk, tn), b_ref: (1, tn), o_ref: (tm, tn)
    k = pl.program_id(2)

    @pl.when(k == 0)
    def _():
        acc_ref[...] = jnp.zeros_like(acc_ref)

    acc_ref[...] += jnp.dot(x_ref[...], w_ref[...],
                            preferred_element_type=jnp.float32)

    @pl.when(k == pl.num_programs(2) - 1)
    def _():
        # Bias is added exactly once, on the final K step.
        o_ref[...] = (acc_ref[...] + b_ref[...]).astype(o_ref.dtype)


# --------------------------------------------------------------------------
# pallas_call wrappers
# --------------------------------------------------------------------------
def _linear_resident(x_c, w_c, b_c, out_dtype, M, K, N, vmem_limit, tm_cap, cb, ob):
    # VMEM budget: x-tile and out-tile are double-buffered by the pipeline.
    # W / bias use a constant block index so they are only *fetched* once, but
    # Pallas still reserves two buffers for them -> count them 2x here.
    fixed = 2 * (K * N * cb + N * 4)
    per_row = 2 * (K * cb + N * ob)
    avail = max(int(0.85 * vmem_limit) - fixed, 0)
    tm_fit = max(16, (avail // per_row) // 16 * 16)     # multiple of 16 (bf16 pack)

    if M <= min(tm_cap, tm_fit):
        tm = M                                          # single full-dim block (exempt)
    else:
        tm = min(tm_cap, tm_fit)
        # Keep >= 2 M-steps so both v7x TensorCores get work (harmless on 1-TC chips).
        tm = min(tm, max(128, _round_up(_cdiv(M, 2), 128)))
        tm = max(tm, 16)
    grid = (_cdiv(M, tm),)

    cost = pl.CostEstimate(
        flops=2 * M * N * K,
        bytes_accessed=cb * (M * K + K * N) + 4 * N + ob * M * N,
        transcendentals=0,
    )
    return pl.pallas_call(
        _linear_resident_kernel,
        out_shape=jax.ShapeDtypeStruct((M, N), out_dtype),
        grid_spec=pltpu.PrefetchScalarGridSpec(
            num_scalar_prefetch=0,
            grid=grid,
            in_specs=[
                pl.BlockSpec((tm, K), lambda i: (i, 0)),   # K = full dim -> exempt
                pl.BlockSpec((K, N), lambda i: (0, 0)),    # fully-resident weight
                pl.BlockSpec((1, N), lambda i: (0, 0)),    # f32 bias
            ],
            out_specs=pl.BlockSpec((tm, N), lambda i: (i, 0)),  # N = full dim, no pad/slice
        ),
        compiler_params=pltpu.CompilerParams(
            dimension_semantics=("parallel",),
            vmem_limit_bytes=vmem_limit,
        ),
        cost_estimate=cost,
    )(x_c, w_c, b_c)


def _linear_tiled(x_c, w_c, b_c, out_dtype, M, K, N, vmem_limit, big_vmem, cb, ob):
    # Rare path (very large weights).  K must be zero-padded for the reduction
    # (ragged K blocks would feed garbage into the accumulator); M uses a cdiv
    # grid with masked ragged stores, so x is only copied when K needs padding.
    K_pad = _round_up(K, 128)
    N_pad = _round_up(N, 128)
    tn = _pick_tile(N_pad, (512, 256, 128))
    tk = _pick_tile(K_pad, (1024, 512, 256, 128) if big_vmem else (512, 256, 128))
    tm = M if M <= 512 else 512

    if K_pad != K:
        x_c = jnp.pad(x_c, ((0, 0), (0, K_pad - K)))   # zero K-pad: contributes 0
    if (K_pad, N_pad) != (K, N):
        w_c = jnp.pad(w_c, ((0, K_pad - K), (0, N_pad - N)))
    if N_pad != N:
        b_c = jnp.pad(b_c, ((0, 0), (0, N_pad - N)))

    gm, gn, gk = _cdiv(M, tm), N_pad // tn, K_pad // tk
    cost = pl.CostEstimate(
        flops=2 * M * N_pad * K_pad,
        # In this schedule x is re-read gn times and W is re-read gm times.
        bytes_accessed=cb * (M * K_pad * gn + K_pad * N_pad * gm) + ob * M * N_pad,
        transcendentals=0,
    )
    out_p = pl.pallas_call(
        _linear_tiled_kernel,
        out_shape=jax.ShapeDtypeStruct((M, N_pad), out_dtype),
        grid_spec=pltpu.PrefetchScalarGridSpec(
            num_scalar_prefetch=0,
            grid=(gm, gn, gk),
            in_specs=[
                pl.BlockSpec((tm, tk), lambda i, j, k: (i, k)),
                pl.BlockSpec((tk, tn), lambda i, j, k: (k, j)),
                pl.BlockSpec((1, tn), lambda i, j, k: (0, j)),
            ],
            out_specs=pl.BlockSpec((tm, tn), lambda i, j, k: (i, j)),
            scratch_shapes=[pltpu.VMEM((tm, tn), jnp.float32)],
        ),
        compiler_params=pltpu.CompilerParams(
            dimension_semantics=("parallel", "parallel", "arbitrary"),
            vmem_limit_bytes=vmem_limit,
        ),
        cost_estimate=cost,
    )(x_c, w_c, b_c)
    return out_p if N_pad == N else out_p[:, :N]


_TINY_BYTES = 256 * 1024   # bytes-based bypass: the op is HBM-bandwidth bound


def pallas_linear(x2d, w, b, *, force_pallas=False):
    """y = x2d @ w + b  (x2d: (M, K), w: (K, N), b: (N,) or (1, N))."""
    M, K = x2d.shape
    K2, N = w.shape
    assert K == K2, (K, K2)
    out_dtype = x2d.dtype

    # Tiny-problem bypass: per-grid-step / launch overhead dominates.
    approx_bytes = 4 * (M * K + K * N + M * N)
    if not force_pallas and approx_bytes < _TINY_BYTES:
        return (x2d @ w + b.reshape(1, N)).astype(out_dtype)

    # bf16 streaming of x / w (halves HBM bytes for this mem-bound op); the
    # casts fuse into upstream producers under jit.  Accumulation stays f32.
    use_bf16 = (x2d.dtype == jnp.float32) or (x2d.dtype == jnp.bfloat16)
    compute_dtype = jnp.bfloat16 if use_bf16 else x2d.dtype
    x_c = x2d.astype(compute_dtype)
    w_c = w.astype(compute_dtype)
    b_c = b.reshape(1, N).astype(jnp.float32)

    cb = jnp.dtype(compute_dtype).itemsize
    ob = jnp.dtype(out_dtype).itemsize

    vmem_limit, resident_w_bytes, tm_cap, big_vmem = _hw_budget()

    if K * N * cb <= resident_w_bytes:
        return _linear_resident(x_c, w_c, b_c, out_dtype, M, K, N,
                                vmem_limit, tm_cap, cb, ob)
    return _linear_tiled(x_c, w_c, b_c, out_dtype, M, K, N,
                         vmem_limit, big_vmem, cb, ob)


# --------------------------------------------------------------------------
# TimeDistributed(nn.Linear) forward
# --------------------------------------------------------------------------
def time_distributed_linear(x, w, b, batch_first=False, *, force_pallas=False):
    """Replicates TimeDistributed(nn.Linear)(x).

    x: rank<=2 -> apply linear directly.
       rank>=3 -> flatten all leading dims, apply linear, reshape back.
    """
    out_features = w.shape[-1]
    if x.ndim <= 2:
        x2d = x if x.ndim == 2 else x[None, :]
        y = pallas_linear(x2d, w, b, force_pallas=force_pallas)
        return y if x.ndim == 2 else y[0]

    in_features = x.shape[-1]
    x_reshape = x.reshape(-1, in_features)      # x.contiguous().view(-1, x.size(-1))
    y = pallas_linear(x_reshape, w, b, force_pallas=force_pallas)
    if batch_first:
        return y.reshape(x.shape[0], -1, out_features)   # y.view(x.size(0), -1, ...)
    return y.reshape(-1, x.shape[1], out_features)       # y.view(-1, x.size(1), ...)


if __name__ == "__main__":
    key = jax.random.PRNGKey(0)
    kx, kw, kb = jax.random.split(key, 3)

    seq, batch, in_features, out_features = 8, 2, 32, 32

    # Deterministic synthetic parameters (nn.Linear(in_features, out_features)).
    w_t = jax.random.normal(kw, (out_features, in_features), jnp.float32) * 0.1  # torch (out, in)
    w = w_t.T                                                                    # (in, out)
    b = jax.random.normal(kb, (1, out_features), jnp.float32) * 0.1

    # Input in (seq, batch, in_features) layout (batch_first=False).
    x = jax.random.normal(kx, (seq, batch, in_features), jnp.float32)

    # force_pallas=True so the kernel path is exercised even at demo sizes
    # (the wrapper would otherwise route tiny problems to plain XLA).
    y = time_distributed_linear(x, w, b, batch_first=False, force_pallas=True)
    y = jax.block_until_ready(y)
    assert y.shape == (seq, batch, out_features), y.shape

    # Reference using the same bf16-rounded inputs the kernel streams
    # (f32 accumulation on both sides) -> tight tolerance.
    x_r = x.astype(jnp.bfloat16).astype(jnp.float32)
    w_r = w.astype(jnp.bfloat16).astype(jnp.float32)
    y_ref = (x_r.reshape(-1, in_features) @ w_r + b).reshape(-1, batch, out_features)
    assert jnp.allclose(y, y_ref, atol=1e-4, rtol=1e-4), float(jnp.max(jnp.abs(y - y_ref)))

    # Looser check against the full-f32 reference (bf16 input rounding only).
    y_f32 = (x.reshape(-1, in_features) @ w + b).reshape(-1, batch, out_features)
    assert jnp.allclose(y, y_f32, atol=5e-2, rtol=5e-2)

    # Also exercise the rank-2 path (TimeDistributed passes through directly).
    y2 = time_distributed_linear(x[0], w, b, force_pallas=True)
    y2 = jax.block_until_ready(y2)
    assert jnp.allclose(y2, x_r[0] @ w_r + b, atol=1e-4, rtol=1e-4)

    print("KERNEL_OK")
</pallas_src>

<mosaic_0001>
module attributes {stable_mosaic.version = 11 : i64} {
  func.func @_linear_resident_kernel(%arg0: i32, %arg1: memref<16x32xbf16, #tpu.memory_space<vmem>>, %arg2: memref<32x32xbf16, #tpu.memory_space<vmem>>, %arg3: memref<1x32xf32, #tpu.memory_space<vmem>>, %arg4: memref<16x32xf32, #tpu.memory_space<vmem>>) attributes {dimension_semantics = [#tpu.dimension_semantics<parallel>], iteration_bounds = array<i64: 1>, scalar_prefetch = 0 : i64, scratch_operands = 0 : i64, tpu.core_type = #tpu.core_type<tc>, window_params = [{transform_indices = @transform_0, window_bounds = array<i64: 16, 32>}, {pipeline_mode = #tpu.pipeline_mode<synchronous>, transform_indices = @transform_1, window_bounds = array<i64: 32, 32>}, {pipeline_mode = #tpu.pipeline_mode<synchronous>, transform_indices = @transform_2, window_bounds = array<i64: 1, 32>}, {transform_indices = @transform_3, window_bounds = array<i64: 16, 32>}]} {
    %c0 = arith.constant 0 : index
    %c0_0 = arith.constant 0 : index
    %0 = vector.load %arg1[%c0, %c0_0] : memref<16x32xbf16, #tpu.memory_space<vmem>>, vector<16x32xbf16>
    %c0_1 = arith.constant 0 : index
    %c0_2 = arith.constant 0 : index
    %1 = vector.load %arg2[%c0_1, %c0_2] : memref<32x32xbf16, #tpu.memory_space<vmem>>, vector<32x32xbf16>
    %cst = arith.constant dense<0.000000e+00> : vector<16x32xf32>
    %2 = tpu.matmul %0, %1, %cst {dimension_numbers = #tpu.dot_dimension_numbers<[1], [0], [0], [1], [0, 0, 1, 1], [], []>} : vector<16x32xbf16>, vector<32x32xbf16>, vector<16x32xf32> -> vector<16x32xf32>
    %c0_3 = arith.constant 0 : index
    %c0_4 = arith.constant 0 : index
    %3 = vector.load %arg3[%c0_3, %c0_4] : memref<1x32xf32, #tpu.memory_space<vmem>>, vector<1x32xf32>
    %4 = vector.broadcast %3 : vector<1x32xf32> to vector<16x32xf32>
    %5 = arith.addf %2, %4 : vector<16x32xf32>
    %c0_5 = arith.constant 0 : index
    %c0_6 = arith.constant 0 : index
    %6 = vector.load %arg4[%c0_5, %c0_6] : memref<16x32xf32, #tpu.memory_space<vmem>>, vector<16x32xf32>
    tpu.vector_store %arg4[%c0_5, %c0_6], %5 {strides = array<i32>} : memref<16x32xf32, #tpu.memory_space<vmem>>, vector<16x32xf32>,
    return
  }
  func.func @transform_0(%arg0: i32) -> (i32, i32) {
    %c0_i32 = arith.constant 0 : i32
    %c0_i32_0 = arith.constant 0 : i32
    return %arg0, %c0_i32 : i32, i32
  }
  func.func @transform_1(%arg0: i32) -> (i32, i32) {
    %c0_i32 = arith.constant 0 : i32
    %c0_i32_0 = arith.constant 0 : i32
    %c0_i32_1 = arith.constant 0 : i32
    return %c0_i32, %c0_i32_0 : i32, i32
  }
  func.func @transform_2(%arg0: i32) -> (i32, i32) {
    %c0_i32 = arith.constant 0 : i32
    %c0_i32_0 = arith.constant 0 : i32
    %c0_i32_1 = arith.constant 0 : i32
    return %c0_i32, %c0_i32_0 : i32, i32
  }
  func.func @transform_3(%arg0: i32) -> (i32, i32) {
    %c0_i32 = arith.constant 0 : i32
    %c0_i32_0 = arith.constant 0 : i32
    return %arg0, %c0_i32 : i32, i32
  }
}

</mosaic_0001>

<llo_original>
// kernel: tpu_custom_call.1
$region0: #{tpu_custom_call.1}
  #allocation0 [shape = 'u32[]', space=smem, size = 0x4, offset = 0x4, fixed_abs, tag = 'smem constant byte address 0x4 - core index']
  #allocation1 [shape = 'u32[72,128]{1,0:T(1,128)}', space=vmem, size = 0x9000, scoped, tag = 'internal scratch']
  %s0 = inlined_call_operand.hbm [shape: bf16[16,32], index: 0, kind: input, shape index: {}]
  %s1 = inlined_call_operand.hbm [shape: bf16[32,32], index: 1, kind: input, shape index: {}]
  %s2 = inlined_call_operand.vmem [shape: f32[1,32], index: 2, kind: input, shape index: {}]
  %s3 = inlined_call_operand.hbm [shape: f32[16,32], index: 3, kind: output, shape index: {}]
  %s4 = sld [smem:[#allocation0]]
  $region30: #{tpu_custom_call.1} parent=0
    _
  %s6 = ssub.s32 1, %s4
  %s7 = scalar_select 0, %s6, %s4
  $region1: #{tpu_custom_call.1} parent=0
    #allocation2 [shape = 'u8[4096]{0}', space=vmem, size = 0x1000, scoped, tag = 'input window, operand 0, single buffered']
    #allocation3 [shape = 's32[1]{0}', space=sflag, size = 0x4, scoped, tag = 'scoped memory for tpu_custom_call.1']
    #allocation4 [shape = 's32[1]{0}', space=sflag, size = 0x4, scoped, tag = 'scoped memory for tpu_custom_call.1']
    #allocation5 [shape = 'u8[8192]{0}', space=vmem, size = 0x2000, scoped, tag = 'input window, operand 1, single buffered']
    #allocation6 [shape = 's32[1]{0}', space=sflag, size = 0x4, scoped, tag = 'scoped memory for tpu_custom_call.1']
    #allocation7 [shape = 'u8[8192]{0}', space=vmem, size = 0x2000, scoped, tag = 'output window, operand 0, single buffered']
    %8 = vsyncpa [#allocation3], 0
    %9 = vsyncpa [#allocation6], 0
    %10 = vsyncpa [#allocation4], 0
    // Predicated region
    $region2: #{tpu_custom_call.1} parent=1 // pred_check
      _
    $region3: #{tpu_custom_call.1} parent=1 // pred_check_branch
      %12 = sbr.rel (0) target = $region5
    $region4: #{tpu_custom_call.1} parent=1 // pred_region
      %14 = vsyncadd [#allocation3], 0
      %s15 = sshll.u32 %s0, 4
      %s16 = int_to_ptr.hbm [resolvable:$true] %s15
      %s17 = sshll.u32 [#allocation2], 4
      %s18 = int_to_ptr.vmem [resolvable:$true] %s17
      %23 = dma.hbm_to_vmem [thread:$0]  %s16, 128, %s18, [#allocation3], 64, 64, 4
    $region5: #{tpu_custom_call.1} parent=1 // pred_fallthru
      _
    // Predicated region
    $region6: #{tpu_custom_call.1} parent=1 // pred_check
      _
    $region7: #{tpu_custom_call.1} parent=1 // pred_check_branch
      %25 = sbr.rel (0) target = $region9
    $region8: #{tpu_custom_call.1} parent=1 // pred_region
      %27 = vsyncadd [#allocation6], 0
      %s28 = sshll.u32 %s1, 4
      %s29 = int_to_ptr.hbm [resolvable:$true] %s28
      %s30 = sshll.u32 [#allocation5], 4
      %s31 = int_to_ptr.vmem [resolvable:$true] %s30
      %36 = dma.hbm_to_vmem [thread:$0]  %s29, 256, %s31, [#allocation6], 64, 64, 4
    $region9: #{tpu_custom_call.1} parent=1 // pred_fallthru
      _
    // Predicated region
    $region10: #{tpu_custom_call.1} parent=1 // pred_check
      _
    $region11: #{tpu_custom_call.1} parent=1 // pred_check_branch
      %38 = sbr.rel (0) target = $region13
    $region12: #{tpu_custom_call.1} parent=1 // pred_region
      _
    $region13: #{tpu_custom_call.1} parent=1 // pred_fallthru
      _
    // Predicated region
    $region14: #{tpu_custom_call.1} parent=1 // pred_check
      _
    $region15: #{tpu_custom_call.1} parent=1 // pred_check_branch
      %40 = sbr.rel (0) target = $region17
    $region16: #{tpu_custom_call.1} parent=1 // pred_region
      %42 = dma.done [#allocation3], 128
    $region17: #{tpu_custom_call.1} parent=1 // pred_fallthru
      _
    // Predicated region
    $region18: #{tpu_custom_call.1} parent=1 // pred_check
      _
    $region19: #{tpu_custom_call.1} parent=1 // pred_check_branch
      %44 = sbr.rel (0) target = $region21
    $region20: #{tpu_custom_call.1} parent=1 // pred_region
      %46 = dma.done [#allocation6], 256
    $region21: #{tpu_custom_call.1} parent=1 // pred_fallthru
      _
    %v48 = vld [vmem:[#allocation2] sm:$0xf]
    %v49 = vld [vmem:[#allocation2 + $0x4] sm:$0xf]
    %v50 = vld [vmem:[#allocation5] sm:$0xf]
    %v51 = vld [vmem:[#allocation5 + $0x4] sm:$0xf]
    %v52 = vld [vmem:[#allocation5 + $0x8] sm:$0xf]
    %v53 = vld [vmem:[#allocation5 + $0xc] sm:$0xf]
    %v54 = vld [vmem:[%s2] sm:$0x1]
    %v56 = vperm.slane %v54, 0
    %v60 = vunpack.c.l.b16 %v48
    %v61 = vunpack.c.l.b16 %v49
    %v62 = vpack.c.b16 %v61, %v60
    %v67 = vunpack.c.l.b16 %v50
    %v68 = vunpack.c.l.b16 %v51
    %v69 = vunpack.c.l.b16 %v52
    %v70 = vunpack.c.l.b16 %v53
    %v71 = vpack.c.b16 %v68, %v67
    %v72 = vpack.c.b16 %v70, %v69
    %vm75 = vcmask 261120
    %v77 = vsel %vm75, %v62, 0
    %79 = vmatpush.bf16.msra.mxu0 0
    %80 = vmatpush.bf16.msra.mxu0 0
    %81 = vmatpush.bf16.msra.mxu0 0
    %82 = vmatpush.bf16.msra.mxu0 0
    %83 = vmatpush.bf16.msra.mxu0 0
    %84 = vmatpush.bf16.msra.mxu0 0
    %85 = vmatpush.bf16.msra.mxu0 %v72
    %86 = vmatpush.bf16.msra.mxu0 %v71
    %87 = vmatmul.bf16.gmra.mxu0 %v77
    %v88 = vpop.f32.mrf.mxu0
    %v89 = vadd.f32 %v56, %v88
    %v90 = vpop.f32.mrf.mxu0
    %v91 = vadd.f32 %v56, %v90
    %92 = vdwg.mxu0
    %93 = vst.msk [vmem:[#allocation7] sm:$0xff] %vm75, %v89
    %94 = vst.msk [vmem:[#allocation7 + $0x8] sm:$0xff] %vm75, %v91
    // Predicated region
    $region22: #{tpu_custom_call.1} parent=1 // pred_check
      _
    $region23: #{tpu_custom_call.1} parent=1 // pred_check_branch
      %96 = sbr.rel (0) target = $region25
    $region24: #{tpu_custom_call.1} parent=1 // pred_region
      %98 = vsyncadd [#allocation4], 0
      %s99 = sshll.u32 [#allocation7], 4
      %s100 = int_to_ptr.vmem [resolvable:$true] %s99
      %s101 = sshll.u32 %s3, 4
      %s102 = int_to_ptr.hbm [resolvable:$true] %s101
      %107 = dma.vmem_to_hbm [thread:$0]  %s100, 256, %s102, [#allocation4], 128, 128, 8
    $region25: #{tpu_custom_call.1} parent=1 // pred_fallthru
      _
    // Predicated region
    $region26: #{tpu_custom_call.1} parent=1 // pred_check
      _
    $region27: #{tpu_custom_call.1} parent=1 // pred_check_branch
      %109 = sbr.rel (0) target = $region29
    $region28: #{tpu_custom_call.1} parent=1 // pred_region
      %111 = dma.done [#allocation4], 256
    $region29: #{tpu_custom_call.1} parent=1 // pred_fallthru
      _
    %112 = vsyncpa [#allocation3], 1
    %113 = vsyncpa [#allocation6], 1
    %114 = vsyncpa [#allocation4], 1

</llo_original>
